<compile_context>
chip_gen: v7x
topology: tpu7x:2x2x1
jax: 0.10.0
libtpu: 0.0.40
codegen_flags: <defaults>
</compile_context>

<pallas_src>
import jax
import jax.numpy as jnp
from jax.experimental import pallas as pl
from jax.experimental.pallas import tpu as pltpu

FEAT_PAD = 128          # pad every feature dim to one lane width
TARGET_TILE_ROWS = 512  # ~512-row tiles: good HBM-roofline fraction, tiny VMEM


def _round_up(x, m):
    return ((x + m - 1) // m) * m


def _pad2(a, rows, cols):
    return jnp.pad(a, ((0, rows - a.shape[0]), (0, cols - a.shape[1])))


# ----------------------------- Pallas kernel ------------------------------- #

def mlp_kernel(x_ref, w1_ref, b1e_ref, w2_ref, b2_ref, w3_ref, b3_ref, o_ref):
    # layer 1: bf16 operands on the MXU, f32 accumulate. The embedding term is
    # already folded into the per-row (per-series) bias b1e (f32).
    h = jnp.dot(x_ref[...], w1_ref[...], preferred_element_type=jnp.float32)
    h = jnp.maximum(h + b1e_ref[...], 0.0)
    # layer 2
    h = jnp.dot(h.astype(jnp.bfloat16), w2_ref[...],
                preferred_element_type=jnp.float32)
    h = jnp.maximum(h + b2_ref[...], 0.0)
    # output layer (no activation)
    h = jnp.dot(h.astype(jnp.bfloat16), w3_ref[...],
                preferred_element_type=jnp.float32)
    o_ref[...] = h + b3_ref[...]


# ------------------------- parameter preparation --------------------------- #

def prepare_params(emb_table, params, input_dim, series_dim):
    """Pad weights once (hoisted out of the per-call path) and fold the
    embedding into a per-series first-layer bias."""
    (w1, b1), (w2, b2), (w3, b3) = params
    s_pad = _round_up(series_dim, 8)

    # concat([X, emb]) @ W1 + b1  ==  X @ W1[:input_dim] + (emb @ W1[input_dim:] + b1)
    b1_eff = b1[None, :] + emb_table @ w1[input_dim:, :]            # (S, H1) f32
    b1_eff = _pad2(b1_eff, s_pad, FEAT_PAD)                          # (S_pad, 128)

    w1x = _pad2(w1[:input_dim, :], FEAT_PAD, FEAT_PAD).astype(jnp.bfloat16)
    w2p = _pad2(w2, FEAT_PAD, FEAT_PAD).astype(jnp.bfloat16)
    w3p = _pad2(w3, FEAT_PAD, FEAT_PAD).astype(jnp.bfloat16)
    b2p = _pad2(b2[None, :], 1, FEAT_PAD)                            # f32
    b3p = _pad2(b3[None, :], 1, FEAT_PAD)                            # f32
    return {
        "s_pad": s_pad,
        "series_dim": series_dim,
        "input_dim": input_dim,
        "out_dim": w3.shape[1],
        "b1_eff": b1_eff,
        "w1": w1x, "w2": w2p, "w3": w3p,
        "b2": b2p, "b3": b3p,
    }


# ------------------------------- forward ----------------------------------- #

def mlp_regressor_forward(X, prepared):
    """X: (B, S, input_dim) f32. Returns (B, S, out_dim) f32."""
    B, S, input_dim = X.shape
    assert S == prepared["series_dim"] and input_dim == prepared["input_dim"]
    s_pad = prepared["s_pad"]
    out_dim = prepared["out_dim"]

    # Row tile = TB batches x s_pad rows (so the series pattern inside every
    # tile is identical and the folded bias can be passed pre-tiled).
    tb = max(1, min(TARGET_TILE_ROWS // s_pad, B))
    bp = _round_up(B, tb)
    tm = tb * s_pad
    n_tiles = bp // tb

    # Pad batch and series dims, pad features to one lane width, flatten rows.
    xp = jnp.pad(X, ((0, bp - B), (0, s_pad - S), (0, FEAT_PAD - input_dim)))
    x2d = xp.reshape(bp * s_pad, FEAT_PAD).astype(jnp.bfloat16)
    # Folded per-series bias, repeated for the TB batches of one tile (tiny,
    # stays VMEM-resident across the whole grid).
    b1_tile = jnp.tile(prepared["b1_eff"], (tb, 1))                  # (tm, 128) f32

    out = pl.pallas_call(
        mlp_kernel,
        out_shape=jax.ShapeDtypeStruct((bp * s_pad, FEAT_PAD), jnp.float32),
        grid=(n_tiles,),
        in_specs=[
            pl.BlockSpec((tm, FEAT_PAD), lambda i: (i, 0)),        # x tile (pipelined)
            pl.BlockSpec((FEAT_PAD, FEAT_PAD), lambda i: (0, 0)),  # w1 (resident)
            pl.BlockSpec((tm, FEAT_PAD), lambda i: (0, 0)),        # folded bias (resident)
            pl.BlockSpec((FEAT_PAD, FEAT_PAD), lambda i: (0, 0)),  # w2 (resident)
            pl.BlockSpec((1, FEAT_PAD), lambda i: (0, 0)),         # b2 (resident)
            pl.BlockSpec((FEAT_PAD, FEAT_PAD), lambda i: (0, 0)),  # w3 (resident)
            pl.BlockSpec((1, FEAT_PAD), lambda i: (0, 0)),         # b3 (resident)
        ],
        out_specs=pl.BlockSpec((tm, FEAT_PAD), lambda i: (i, 0)),
        compiler_params=pltpu.CompilerParams(
            dimension_semantics=("parallel",),
        ),
    )(x2d, prepared["w1"], b1_tile, prepared["w2"], prepared["b2"],
      prepared["w3"], prepared["b3"])

    return out.reshape(bp, s_pad, FEAT_PAD)[:B, :S, :out_dim]


# ----------------------- init + pure-JAX reference ------------------------- #

def init_params(key, input_dim, emb_dim, hidden_layers, out_dim, series_dim):
    """Deterministic init mirroring the PyTorch module's parameter shapes.
    Linear: uniform(-1/sqrt(fan_in), 1/sqrt(fan_in)); Embedding: N(0, 1)."""
    keys = jax.random.split(key, 2 * (len(hidden_layers) + 1) + 1)
    emb_table = jax.random.normal(keys[0], (series_dim, emb_dim), jnp.float32)
    params = []
    in_d = input_dim + emb_dim
    dims = list(hidden_layers) + [out_dim]
    ki = 1
    for d in dims:
        bound = 1.0 / jnp.sqrt(in_d)
        w = jax.random.uniform(keys[ki], (in_d, d), jnp.float32, -bound, bound)
        b = jax.random.uniform(keys[ki + 1], (d,), jnp.float32, -bound, bound)
        params.append((w, b))
        in_d = d
        ki += 2
    return emb_table, params


def reference_forward(X, emb_table, params):
    B, S, _ = X.shape
    emb = jnp.broadcast_to(emb_table[None, :, :], (B, S, emb_table.shape[1]))
    h = jnp.concatenate([X, emb], axis=-1)
    for i, (w, b) in enumerate(params):
        h = h @ w + b
        if i < len(params) - 1:
            h = jnp.maximum(h, 0.0)
    return h


if __name__ == "__main__":
    # Shapes consistent with the module:
    #   input_dim=8, embedding_dim=2, hidden_layers=[32, 32],
    #   output_dim=3, quantile_target=[0.05, 0.05] -> model out_dim = 6,
    #   series_dim=21, batch=2.
    B, S = 2, 21
    input_dim, emb_dim = 8, 2
    hidden_layers = [32, 32]
    output_dim, n_quantiles = 3, 2
    out_dim = output_dim * n_quantiles

    key = jax.random.PRNGKey(0)
    k_x, k_p, k_x2 = jax.random.split(key, 3)
    X = jax.random.normal(k_x, (B, S, input_dim), jnp.float32)
    emb_table, params = init_params(k_p, input_dim, emb_dim, hidden_layers,
                                    out_dim, S)
    prepared = prepare_params(emb_table, params, input_dim, S)

    # Toy-size call (single grid tile).
    y = jax.block_until_ready(mlp_regressor_forward(X, prepared))
    y_ref = reference_forward(X, emb_table, params)
    assert y.shape == (B, S, out_dim), y.shape
    # bf16 MXU operands with f32 accumulation -> loosened tolerance vs f32 ref.
    err = float(jnp.max(jnp.abs(y - y_ref)))
    assert err < 8e-2, f"mismatch vs reference (max abs err {err})"

    # Larger batch to exercise multiple grid tiles + batch padding.
    B2 = 50
    X2 = jax.random.normal(k_x2, (B2, S, input_dim), jnp.float32)
    y2 = jax.block_until_ready(mlp_regressor_forward(X2, prepared))
    y2_ref = reference_forward(X2, emb_table, params)
    assert y2.shape == (B2, S, out_dim), y2.shape
    err2 = float(jnp.max(jnp.abs(y2 - y2_ref)))
    assert err2 < 8e-2, f"multi-tile mismatch vs reference (max abs err {err2})"

    print("KERNEL_OK")
</pallas_src>

<mosaic_0001>
module attributes {stable_mosaic.version = 11 : i64} {
  func.func @mlp_kernel(%arg0: i32, %arg1: memref<48x128xbf16, #tpu.memory_space<vmem>>, %arg2: memref<128x128xbf16, #tpu.memory_space<vmem>>, %arg3: memref<48x128xf32, #tpu.memory_space<vmem>>, %arg4: memref<128x128xbf16, #tpu.memory_space<vmem>>, %arg5: memref<1x128xf32, #tpu.memory_space<vmem>>, %arg6: memref<128x128xbf16, #tpu.memory_space<vmem>>, %arg7: memref<1x128xf32, #tpu.memory_space<vmem>>, %arg8: memref<48x128xf32, #tpu.memory_space<vmem>>) attributes {dimension_semantics = [#tpu.dimension_semantics<parallel>], iteration_bounds = array<i64: 1>, scalar_prefetch = 0 : i64, scratch_operands = 0 : i64, tpu.core_type = #tpu.core_type<tc>, window_params = [{transform_indices = @transform_0, window_bounds = array<i64: 48, 128>}, {pipeline_mode = #tpu.pipeline_mode<synchronous>, transform_indices = @transform_1, window_bounds = array<i64: 128, 128>}, {pipeline_mode = #tpu.pipeline_mode<synchronous>, transform_indices = @transform_2, window_bounds = array<i64: 48, 128>}, {pipeline_mode = #tpu.pipeline_mode<synchronous>, transform_indices = @transform_3, window_bounds = array<i64: 128, 128>}, {pipeline_mode = #tpu.pipeline_mode<synchronous>, transform_indices = @transform_4, window_bounds = array<i64: 1, 128>}, {pipeline_mode = #tpu.pipeline_mode<synchronous>, transform_indices = @transform_5, window_bounds = array<i64: 128, 128>}, {pipeline_mode = #tpu.pipeline_mode<synchronous>, transform_indices = @transform_6, window_bounds = array<i64: 1, 128>}, {transform_indices = @transform_7, window_bounds = array<i64: 48, 128>}]} {
    %c0 = arith.constant 0 : index
    %c0_0 = arith.constant 0 : index
    %0 = vector.load %arg1[%c0, %c0_0] : memref<48x128xbf16, #tpu.memory_space<vmem>>, vector<48x128xbf16>
    %c0_1 = arith.constant 0 : index
    %c0_2 = arith.constant 0 : index
    %1 = vector.load %arg2[%c0_1, %c0_2] : memref<128x128xbf16, #tpu.memory_space<vmem>>, vector<128x128xbf16>
    %cst = arith.constant dense<0.000000e+00> : vector<48x128xf32>
    %2 = tpu.matmul %0, %1, %cst {dimension_numbers = #tpu.dot_dimension_numbers<[1], [0], [0], [1], [0, 0, 1, 1], [], []>} : vector<48x128xbf16>, vector<128x128xbf16>, vector<48x128xf32> -> vector<48x128xf32>
    %c0_3 = arith.constant 0 : index
    %c0_4 = arith.constant 0 : index
    %3 = vector.load %arg3[%c0_3, %c0_4] : memref<48x128xf32, #tpu.memory_space<vmem>>, vector<48x128xf32>
    %4 = arith.addf %2, %3 : vector<48x128xf32>
    %cst_5 = arith.constant 0.000000e+00 : f32
    %5 = vector.broadcast %cst_5 : f32 to vector<48x128xf32>
    %6 = arith.maximumf %4, %5 : vector<48x128xf32>
    %7 = arith.truncf %6 : vector<48x128xf32> to vector<48x128xbf16>
    %c0_6 = arith.constant 0 : index
    %c0_7 = arith.constant 0 : index
    %8 = vector.load %arg4[%c0_6, %c0_7] : memref<128x128xbf16, #tpu.memory_space<vmem>>, vector<128x128xbf16>
    %cst_8 = arith.constant dense<0.000000e+00> : vector<48x128xf32>
    %9 = tpu.matmul %7, %8, %cst_8 {dimension_numbers = #tpu.dot_dimension_numbers<[1], [0], [0], [1], [0, 0, 1, 1], [], []>} : vector<48x128xbf16>, vector<128x128xbf16>, vector<48x128xf32> -> vector<48x128xf32>
    %c0_9 = arith.constant 0 : index
    %c0_10 = arith.constant 0 : index
    %10 = vector.load %arg5[%c0_9, %c0_10] : memref<1x128xf32, #tpu.memory_space<vmem>>, vector<1x128xf32>
    %11 = vector.broadcast %10 : vector<1x128xf32> to vector<48x128xf32>
    %12 = arith.addf %9, %11 : vector<48x128xf32>
    %cst_11 = arith.constant 0.000000e+00 : f32
    %13 = vector.broadcast %cst_11 : f32 to vector<48x128xf32>
    %14 = arith.maximumf %12, %13 : vector<48x128xf32>
    %15 = arith.truncf %14 : vector<48x128xf32> to vector<48x128xbf16>
    %c0_12 = arith.constant 0 : index
    %c0_13 = arith.constant 0 : index
    %16 = vector.load %arg6[%c0_12, %c0_13] : memref<128x128xbf16, #tpu.memory_space<vmem>>, vector<128x128xbf16>
    %cst_14 = arith.constant dense<0.000000e+00> : vector<48x128xf32>
    %17 = tpu.matmul %15, %16, %cst_14 {dimension_numbers = #tpu.dot_dimension_numbers<[1], [0], [0], [1], [0, 0, 1, 1], [], []>} : vector<48x128xbf16>, vector<128x128xbf16>, vector<48x128xf32> -> vector<48x128xf32>
    %c0_15 = arith.constant 0 : index
    %c0_16 = arith.constant 0 : index
    %18 = vector.load %arg7[%c0_15, %c0_16] : memref<1x128xf32, #tpu.memory_space<vmem>>, vector<1x128xf32>
    %19 = vector.broadcast %18 : vector<1x128xf32> to vector<48x128xf32>
    %20 = arith.addf %17, %19 : vector<48x128xf32>
    %c0_17 = arith.constant 0 : index
    %c0_18 = arith.constant 0 : index
    %21 = vector.load %arg8[%c0_17, %c0_18] : memref<48x128xf32, #tpu.memory_space<vmem>>, vector<48x128xf32>
    tpu.vector_store %arg8[%c0_17, %c0_18], %20 {strides = array<i32>} : memref<48x128xf32, #tpu.memory_space<vmem>>, vector<48x128xf32>,
    return
  }
  func.func @transform_0(%arg0: i32) -> (i32, i32) {
    %c0_i32 = arith.constant 0 : i32
    %c0_i32_0 = arith.constant 0 : i32
    return %arg0, %c0_i32 : i32, i32
  }
  func.func @transform_1(%arg0: i32) -> (i32, i32) {
    %c0_i32 = arith.constant 0 : i32
    %c0_i32_0 = arith.constant 0 : i32
    %c0_i32_1 = arith.constant 0 : i32
    return %c0_i32, %c0_i32_0 : i32, i32
  }
  func.func @transform_2(%arg0: i32) -> (i32, i32) {
    %c0_i32 = arith.constant 0 : i32
    %c0_i32_0 = arith.constant 0 : i32
    %c0_i32_1 = arith.constant 0 : i32
    return %c0_i32, %c0_i32_0 : i32, i32
  }
  func.func @transform_3(%arg0: i32) -> (i32, i32) {
    %c0_i32 = arith.constant 0 : i32
    %c0_i32_0 = arith.constant 0 : i32
    %c0_i32_1 = arith.constant 0 : i32
    return %c0_i32, %c0_i32_0 : i32, i32
  }
  func.func @transform_4(%arg0: i32) -> (i32, i32) {
    %c0_i32 = arith.constant 0 : i32
    %c0_i32_0 = arith.constant 0 : i32
    %c0_i32_1 = arith.constant 0 : i32
    return %c0_i32, %c0_i32_0 : i32, i32
  }
  func.func @transform_5(%arg0: i32) -> (i32, i32) {
    %c0_i32 = arith.constant 0 : i32
    %c0_i32_0 = arith.constant 0 : i32
    %c0_i32_1 = arith.constant 0 : i32
    return %c0_i32, %c0_i32_0 : i32, i32
  }
  func.func @transform_6(%arg0: i32) -> (i32, i32) {
    %c0_i32 = arith.constant 0 : i32
    %c0_i32_0 = arith.constant 0 : i32
    %c0_i32_1 = arith.constant 0 : i32
    return %c0_i32, %c0_i32_0 : i32, i32
  }
  func.func @transform_7(%arg0: i32) -> (i32, i32) {
    %c0_i32 = arith.constant 0 : i32
    %c0_i32_0 = arith.constant 0 : i32
    return %arg0, %c0_i32 : i32, i32
  }
}

</mosaic_0001>

<llo_original>
// kernel: tpu_custom_call.1
$region0: #{tpu_custom_call.1}
  #allocation0 [shape = 'u32[]', space=smem, size = 0x4, offset = 0x4, fixed_abs, tag = 'smem constant byte address 0x4 - core index']
  #allocation1 [shape = 'u32[144,128]{1,0:T(1,128)}', space=vmem, size = 0x12000, scoped, tag = 'internal scratch']
  %s0 = inlined_call_operand.hbm [shape: bf16[48,128], index: 0, kind: input, shape index: {}]
  %s1 = inlined_call_operand.hbm [shape: bf16[128,128], index: 1, kind: input, shape index: {}]
  %s2 = inlined_call_operand.hbm [shape: f32[48,128], index: 2, kind: input, shape index: {}]
  %s3 = inlined_call_operand.hbm [shape: bf16[128,128], index: 3, kind: input, shape index: {}]
  %s4 = inlined_call_operand.vmem [shape: f32[1,128], index: 4, kind: input, shape index: {}]
  %s5 = inlined_call_operand.hbm [shape: bf16[128,128], index: 5, kind: input, shape index: {}]
  %s6 = inlined_call_operand.vmem [shape: f32[1,128], index: 6, kind: input, shape index: {}]
  %s7 = inlined_call_operand.hbm [shape: f32[48,128], index: 7, kind: output, shape index: {}]
  %s8 = sld [smem:[#allocation0]]
  $region58: #{tpu_custom_call.1} parent=0
    _
  %s10 = ssub.s32 1, %s8
  %s11 = scalar_select 0, %s10, %s8
  $region1: #{tpu_custom_call.1} parent=0
    #allocation2 [shape = 'u8[12288]{0}', space=vmem, size = 0x3000, scoped, tag = 'input window, operand 0, single buffered']
    #allocation3 [shape = 's32[1]{0}', space=sflag, size = 0x4, scoped, tag = 'scoped memory for tpu_custom_call.1']
    #allocation4 [shape = 's32[1]{0}', space=sflag, size = 0x4, scoped, tag = 'scoped memory for tpu_custom_call.1']
    #allocation5 [shape = 'u8[32768]{0}', space=vmem, size = 0x8000, scoped, tag = 'input window, operand 1, single buffered']
    #allocation6 [shape = 's32[1]{0}', space=sflag, size = 0x4, scoped, tag = 'scoped memory for tpu_custom_call.1']
    #allocation7 [shape = 'u8[24576]{0}', space=vmem, size = 0x6000, scoped, tag = 'input window, operand 2, single buffered']
    #allocation8 [shape = 'u8[32768]{0}', space=vmem, size = 0x8000, scoped, tag = 'input window, operand 3, single buffered']
    #allocation9 [shape = 's32[1]{0}', space=sflag, size = 0x4, scoped, tag = 'scoped memory for tpu_custom_call.1']
    #allocation10 [shape = 'u8[32768]{0}', space=vmem, size = 0x8000, scoped, tag = 'input window, operand 5, single buffered']
    #allocation11 [shape = 'u8[24576]{0}', space=vmem, size = 0x6000, scoped, tag = 'output window, operand 0, single buffered']
    %12 = vsyncpa [#allocation3], 0
    %13 = vsyncpa [#allocation6], 0
    %14 = vsyncpa [#allocation9], 0
    %15 = vsyncpa [#allocation4], 0
    // Predicated region
    $region2: #{tpu_custom_call.1} parent=1 // pred_check
      _
    $region3: #{tpu_custom_call.1} parent=1 // pred_check_branch
      %17 = sbr.rel (0) target = $region5
    $region4: #{tpu_custom_call.1} parent=1 // pred_region
      %s19 = ssub.s32 384, 384
      %20 = vsyncadd [#allocation3], %s19
      %s21 = sshll.u32 [#allocation2], 4
      %s22 = int_to_ptr.vmem [resolvable:$true] %s21
      %27 = dma.hbm_to_vmem [thread:$0]  %s0, 384, %s22, [#allocation3], 64, 64, 4
    $region5: #{tpu_custom_call.1} parent=1 // pred_fallthru
      _
    // Predicated region
    $region6: #{tpu_custom_call.1} parent=1 // pred_check
      _
    $region7: #{tpu_custom_call.1} parent=1 // pred_check_branch
      %29 = sbr.rel (0) target = $region9
    $region8: #{tpu_custom_call.1} parent=1 // pred_region
      %s31 = ssub.s32 1024, 1024
      %32 = vsyncadd [#allocation6], %s31
      %s33 = sshll.u32 [#allocation5], 4
      %s34 = int_to_ptr.vmem [resolvable:$true] %s33
      %39 = dma.hbm_to_vmem [thread:$0]  %s1, 1024, %s34, [#allocation6], 64, 64, 4
    $region9: #{tpu_custom_call.1} parent=1 // pred_fallthru
      _
    // Predicated region
    $region10: #{tpu_custom_call.1} parent=1 // pred_check
      _
    $region11: #{tpu_custom_call.1} parent=1 // pred_check_branch
      %41 = sbr.rel (0) target = $region13
    $region12: #{tpu_custom_call.1} parent=1 // pred_region
      %s43 = ssub.s32 768, 768
      %44 = vsyncadd [#allocation6], %s43
      %s45 = sshll.u32 [#allocation7], 4
      %s46 = int_to_ptr.vmem [resolvable:$true] %s45
      %51 = dma.hbm_to_vmem [thread:$0]  %s2, 768, %s46, [#allocation6], 128, 128, 8
    $region13: #{tpu_custom_call.1} parent=1 // pred_fallthru
      _
    // Predicated region
    $region14: #{tpu_custom_call.1} parent=1 // pred_check
      _
    $region15: #{tpu_custom_call.1} parent=1 // pred_check_branch
      %53 = sbr.rel (0) target = $region17
    $region16: #{tpu_custom_call.1} parent=1 // pred_region
      %s55 = ssub.s32 1024, 1024
      %56 = vsyncadd [#allocation9], %s55
      %s57 = sshll.u32 [#allocation8], 4
      %s58 = int_to_ptr.vmem [resolvable:$true] %s57
      %63 = dma.hbm_to_vmem [thread:$0]  %s3, 1024, %s58, [#allocation9], 64, 64, 4
    $region17: #{tpu_custom_call.1} parent=1 // pred_fallthru
      _
    // Predicated region
    $region18: #{tpu_custom_call.1} parent=1 // pred_check
      _
    $region19: #{tpu_custom_call.1} parent=1 // pred_check_branch
      %65 = sbr.rel (0) target = $region21
    $region20: #{tpu_custom_call.1} parent=1 // pred_region
      _
    $region21: #{tpu_custom_call.1} parent=1 // pred_fallthru
      _
    // Predicated region
    $region22: #{tpu_custom_call.1} parent=1 // pred_check
      _
    $region23: #{tpu_custom_call.1} parent=1 // pred_check_branch
      %67 = sbr.rel (0) target = $region25
    $region24: #{tpu_custom_call.1} parent=1 // pred_region
      %s69 = ssub.s32 1024, 1024
      %70 = vsyncadd [#allocation9], %s69
      %s71 = sshll.u32 [#allocation10], 4
      %s72 = int_to_ptr.vmem [resolvable:$true] %s71
      %77 = dma.hbm_to_vmem [thread:$0]  %s5, 1024, %s72, [#allocation9], 64, 64, 4
    $region25: #{tpu_custom_call.1} parent=1 // pred_fallthru
      _
    // Predicated region
    $region26: #{tpu_custom_call.1} parent=1 // pred_check
      _
    $region27: #{tpu_custom_call.1} parent=1 // pred_check_branch
      %79 = sbr.rel (0) target = $region29
    $region28: #{tpu_custom_call.1} parent=1 // pred_region
      _
    $region29: #{tpu_custom_call.1} parent=1 // pred_fallthru
      _
    // Predicated region
    $region30: #{tpu_custom_call.1} parent=1 // pred_check
      _
    $region31: #{tpu_custom_call.1} parent=1 // pred_check_branch
      %81 = sbr.rel (0) target = $region33
    $region32: #{tpu_custom_call.1} parent=1 // pred_region
      %82 = dma.done [#allocation3], 384
    $region33: #{tpu_custom_call.1} parent=1 // pred_fallthru
      _
    // Predicated region
    $region34: #{tpu_custom_call.1} parent=1 // pred_check
      _
    $region35: #{tpu_custom_call.1} parent=1 // pred_check_branch
      %84 = sbr.rel (0) target = $region37
    $region36: #{tpu_custom_call.1} parent=1 // pred_region
      %85 = dma.done [#allocation6], 1024
    $region37: #{tpu_custom_call.1} parent=1 // pred_fallthru
      _
    // Predicated region
    $region38: #{tpu_custom_call.1} parent=1 // pred_check
      _
    $region39: #{tpu_custom_call.1} parent=1 // pred_check_branch
      %87 = sbr.rel (0) target = $region41
    $region40: #{tpu_custom_call.1} parent=1 // pred_region
      %88 = dma.done [#allocation6], 768
    $region41: #{tpu_custom_call.1} parent=1 // pred_fallthru
      _
    // Predicated region
    $region42: #{tpu_custom_call.1} parent=1 // pred_check
      _
    $region43: #{tpu_custom_call.1} parent=1 // pred_check_branch
      %90 = sbr.rel (0) target = $region45
    $region44: #{tpu_custom_call.1} parent=1 // pred_region
      %91 = dma.done [#allocation9], 1024
    $region45: #{tpu_custom_call.1} parent=1 // pred_fallthru
      _
    // Predicated region
    $region46: #{tpu_custom_call.1} parent=1 // pred_check
      _
    $region47: #{tpu_custom_call.1} parent=1 // pred_check_branch
      %93 = sbr.rel (0) target = $region49
    $region48: #{tpu_custom_call.1} parent=1 // pred_region
      %94 = dma.done [#allocation9], 1024
    $region49: #{tpu_custom_call.1} parent=1 // pred_fallthru
      _
    %v96 = vld [vmem:[#allocation2] sm:$0xf]
    %v97 = vld [vmem:[#allocation2 + $0x4] sm:$0xf]
    %v98 = vld [vmem:[#allocation2 + $0x8] sm:$0xf]
    %v99 = vld [vmem:[#allocation2 + $0xc] sm:$0xf]
    %v100 = vld [vmem:[#allocation2 + $0x10] sm:$0xf]
    %v101 = vld [vmem:[#allocation2 + $0x14] sm:$0xf]
    %v102 = vld [vmem:[#allocation5] sm:$0xf]
    %v103 = vld [vmem:[#allocation5 + $0x4] sm:$0xf]
    %v104 = vld [vmem:[#allocation5 + $0x8] sm:$0xf]
    %v105 = vld [vmem:[#allocation5 + $0xc] sm:$0xf]
    %v106 = vld [vmem:[#allocation5 + $0x10] sm:$0xf]
    %v107 = vld [vmem:[#allocation5 + $0x14] sm:$0xf]
    %v108 = vld [vmem:[#allocation5 + $0x18] sm:$0xf]
    %v109 = vld [vmem:[#allocation5 + $0x1c] sm:$0xf]
    %v110 = vld [vmem:[#allocation5 + $0x20] sm:$0xf]
    %v111 = vld [vmem:[#allocation5 + $0x24] sm:$0xf]
    %v112 = vld [vmem:[#allocation5 + $0x28] sm:$0xf]
    %v113 = vld [vmem:[#allocation5 + $0x2c] sm:$0xf]
    %v114 = vld [vmem:[#allocation5 + $0x30] sm:$0xf]
    %v115 = vld [vmem:[#allocation5 + $0x34] sm:$0xf]
    %v116 = vld [vmem:[#allocation5 + $0x38] sm:$0xf]
    %v117 = vld [vmem:[#allocation5 + $0x3c] sm:$0xf]
    %v118 = vld [vmem:[#allocation7] sm:$0xff]
    %v119 = vld [vmem:[#allocation7 + $0x8] sm:$0xff]
    %v120 = vld [vmem:[#allocation7 + $0x10] sm:$0xff]
    %v121 = vld [vmem:[#allocation7 + $0x18] sm:$0xff]
    %v122 = vld [vmem:[#allocation7 + $0x20] sm:$0xff]
    %v123 = vld [vmem:[#allocation7 + $0x28] sm:$0xff]
    %v130 = vunpack.c.l.b16 %v96
    %v131 = vunpack.c.l.b16 %v97
    %v132 = vunpack.c.l.b16 %v98
    %v133 = vunpack.c.l.b16 %v99
    %v134 = vunpack.c.l.b16 %v100
    %v135 = vunpack.c.l.b16 %v101
    %v136 = vpack.c.b16 %v131, %v130
    %v137 = vpack.c.b16 %v133, %v132
    %v138 = vpack.c.b16 %v135, %v134
    %v158 = vunpack.c.l.b16 %v102
    %v159 = vunpack.c.l.b16 %v103
    %v160 = vunpack.c.l.b16 %v104
    %v161 = vunpack.c.l.b16 %v105
    %v162 = vunpack.c.l.b16 %v106
    %v163 = vunpack.c.l.b16 %v107
    %v164 = vunpack.c.l.b16 %v108
    %v165 = vunpack.c.l.b16 %v109
    %v166 = vunpack.c.l.b16 %v110
    %v167 = vunpack.c.l.b16 %v111
    %v168 = vunpack.c.l.b16 %v112
    %v169 = vunpack.c.l.b16 %v113
    %v170 = vunpack.c.l.b16 %v114
    %v171 = vunpack.c.l.b16 %v115
    %v172 = vunpack.c.l.b16 %v116
    %v173 = vunpack.c.l.b16 %v117
    %v174 = vpack.c.b16 %v159, %v158
    %v175 = vpack.c.b16 %v161, %v160
    %v176 = vpack.c.b16 %v163, %v162
    %v177 = vpack.c.b16 %v165, %v164
    %v178 = vpack.c.b16 %v167, %v166
    %v179 = vpack.c.b16 %v169, %v168
    %v180 = vpack.c.b16 %v171, %v170
    %v181 = vpack.c.b16 %v173, %v172
    %190 = vmatprep.subr.bf16.mxu0 0
    %191 = vmatpush1.bf16.msra.mxu0 %v174
    %192 = vmatprep.subr.bf16.mxu0 0
    %193 = vmatpush1.bf16.msra.mxu0 %v175
    %194 = vmatprep.subr.bf16.mxu0 0
    %195 = vmatpush1.bf16.msra.mxu0 %v176
    %196 = vmatprep.subr.bf16.mxu0 0
    %197 = vmatpush1.bf16.msra.mxu0 %v177
    %198 = vmatprep.subr.bf16.mxu0 0
    %199 = vmatpush1.bf16.msra.mxu0 %v178
    %200 = vmatprep.subr.bf16.mxu0 0
    %201 = vmatpush1.bf16.msra.mxu0 %v179
    %202 = vmatprep.subr.bf16.mxu0 0
    %203 = vmatpush1.bf16.msra.mxu0 %v180
    %204 = vmatprep.subr.bf16.mxu0 0
    %205 = vmatpush1.bf16.msra.mxu0 %v181
    %206 = vmatprep.subr.bf16.mxu0 0
    %207 = vmatpush1.bf16.msra.mxu0 0
    %208 = vmatprep.subr.bf16.mxu0 0
    %209 = vmatpush1.bf16.msra.mxu0 0
    %210 = vmatprep.subr.bf16.mxu0 0
    %211 = vmatpush1.bf16.msra.mxu0 0
    %212 = vmatprep.subr.bf16.mxu0 0
    %213 = vmatpush1.bf16.msra.mxu0 0
    %214 = vmatprep.subr.bf16.mxu0 0
    %215 = vmatpush1.bf16.msra.mxu0 0
    %216 = vmatprep.subr.bf16.mxu0 0
    %217 = vmatpush1.bf16.msra.mxu0 0
    %218 = vmatprep.subr.bf16.mxu0 0
    %219 = vmatpush1.bf16.msra.mxu0 0
    %220 = vmatprep.subr.bf16.mxu0 0
    %221 = vmatpush1.bf16.msra.mxu0 0
    %222 = vmatprep.mubr.bf16.mxu0 0
    %223 = vmatmul.mubr.bf16.gmra.mrb[0].mxu0 %v136
    %v224 = vpop.f32.mrb[0].mxu0
    %v225 = vadd.f32 %v118, %v224
    %v226 = vpop.f32.mrb[0].mxu0
    %v227 = vpop.f32.mrb[0].mxu0
    %v228 = vadd.f32 %v119, %v227
    %v229 = vpop.f32.mrb[0].mxu0
    %230 = vmatprep.mubr.bf16.mxu0 0
    %231 = vmatmul.mubr.bf16.gmra.mrb[0].mxu0 %v137
    %v232 = vpop.f32.mrb[0].mxu0
    %v233 = vadd.f32 %v120, %v232
    %v234 = vpop.f32.mrb[0].mxu0
    %v235 = vpop.f32.mrb[0].mxu0
    %v236 = vadd.f32 %v121, %v235
    %v237 = vpop.f32.mrb[0].mxu0
    %238 = vmatprep.mubr.bf16.mxu0 0
    %239 = vmatmul.mubr.bf16.gmra.mrb[0].mxu0 %v138
    %v240 = vpop.f32.mrb[0].mxu0
    %v241 = vadd.f32 %v122, %v240
    %v242 = vpop.f32.mrb[0].mxu0
    %v243 = vpop.f32.mrb[0].mxu0
    %v244 = vadd.f32 %v123, %v243
    %v245 = vpop.f32.mrb[0].mxu0
    %246 = vdwg.mxu0
    %v247 = vmax.f32 %v225, 0.0
    %v248 = vmax.f32 %v228, 0.0
    %v249 = vmax.f32 %v233, 0.0
    %v250 = vmax.f32 %v236, 0.0
    %v251 = vmax.f32 %v241, 0.0
    %v252 = vmax.f32 %v244, 0.0
    %v253 = vpack.c.bf16 %v248, %v247
    %v254 = vpack.c.bf16 %v250, %v249
    %v255 = vpack.c.bf16 %v252, %v251
    %v256 = vld [vmem:[#allocation8] sm:$0xf]
    %v257 = vld [vmem:[#allocation8 + $0x4] sm:$0xf]
    %v258 = vld [vmem:[#allocation8 + $0x8] sm:$0xf]
    %v259 = vld [vmem:[#allocation8 + $0xc] sm:$0xf]
    %v260 = vld [vmem:[#allocation8 + $0x10] sm:$0xf]
    %v261 = vld [vmem:[#allocation8 + $0x14] sm:$0xf]
    %v262 = vld [vmem:[#allocation8 + $0x18] sm:$0xf]
    %v263 = vld [vmem:[#allocation8 + $0x1c] sm:$0xf]
    %v264 = vld [vmem:[#allocation8 + $0x20] sm:$0xf]
    %v265 = vld [vmem:[#allocation8 + $0x24] sm:$0xf]
    %v266 = vld [vmem:[#allocation8 + $0x28] sm:$0xf]
    %v267 = vld [vmem:[#allocation8 + $0x2c] sm:$0xf]
    %v268 = vld [vmem:[#allocation8 + $0x30] sm:$0xf]
    %v269 = vld [vmem:[#allocation8 + $0x34] sm:$0xf]
    %v270 = vld [vmem:[#allocation8 + $0x38] sm:$0xf]
    %v271 = vld [vmem:[#allocation8 + $0x3c] sm:$0xf]
    %v272 = vld [vmem:[%s4] sm:$0x1]
    %v274 = vlaneseq
    %v275 = vshrl.u32 %v274, 7
    %v276 = vsub.s32 0, %v275
    %v277 = vrot.slane %v272, %v276
    %v295 = vunpack.c.l.b16 %v256
    %v296 = vunpack.c.l.b16 %v257
    %v297 = vunpack.c.l.b16 %v258
    %v298 = vunpack.c.l.b16 %v259
    %v299 = vunpack.c.l.b16 %v260
    %v300 = vunpack.c.l.b16 %v261
    %v301 = vunpack.c.l.b16 %v262
    %v302 = vunpack.c.l.b16 %v263
    %v303 = vunpack.c.l.b16 %v264
    %v304 = vunpack.c.l.b16 %v265
    %v305 = vunpack.c.l.b16 %v266
    %v306 = vunpack.c.l.b16 %v267
    %v307 = vunpack.c.l.b16 %v268
    %v308 = vunpack.c.l.b16 %v269
    %v309 = vunpack.c.l.b16 %v270
    %v310 = vunpack.c.l.b16 %v271
    %v311 = vpack.c.b16 %v296, %v295
    %v312 = vpack.c.b16 %v298, %v297
    %v313 = vpack.c.b16 %v300, %v299
    %v314 = vpack.c.b16 %v302, %v301
    %v315 = vpack.c.b16 %v304, %v303
    %v316 = vpack.c.b16 %v306, %v305
    %v317 = vpack.c.b16 %v308, %v307
    %v318 = vpack.c.b16 %v310, %v309
    %327 = vmatprep.subr.bf16.mxu0 0
    %328 = vmatpush1.bf16.msra.mxu0 %v311
    %329 = vmatprep.subr.bf16.mxu0 0
    %330 = vmatpush1.bf16.msra.mxu0 %v312
    %331 = vmatprep.subr.bf16.mxu0 0
    %332 = vmatpush1.bf16.msra.mxu0 %v313
    %333 = vmatprep.subr.bf16.mxu0 0
    %334 = vmatpush1.bf16.msra.mxu0 %v314
    %335 = vmatprep.subr.bf16.mxu0 0
    %336 = vmatpush1.bf16.msra.mxu0 %v315
    %337 = vmatprep.subr.bf16.mxu0 0
    %338 = vmatpush1.bf16.msra.mxu0 %v316
    %339 = vmatprep.subr.bf16.mxu0 0
    %340 = vmatpush1.bf16.msra.mxu0 %v317
    %341 = vmatprep.subr.bf16.mxu0 0
    %342 = vmatpush1.bf16.msra.mxu0 %v318
    %343 = vmatprep.subr.bf16.mxu0 0
    %344 = vmatpush1.bf16.msra.mxu0 0
    %345 = vmatprep.subr.bf16.mxu0 0
    %346 = vmatpush1.bf16.msra.mxu0 0
    %347 = vmatprep.subr.bf16.mxu0 0
    %348 = vmatpush1.bf16.msra.mxu0 0
    %349 = vmatprep.subr.bf16.mxu0 0
    %350 = vmatpush1.bf16.msra.mxu0 0
    %351 = vmatprep.subr.bf16.mxu0 0
    %352 = vmatpush1.bf16.msra.mxu0 0
    %353 = vmatprep.subr.bf16.mxu0 0
    %354 = vmatpush1.bf16.msra.mxu0 0
    %355 = vmatprep.subr.bf16.mxu0 0
    %356 = vmatpush1.bf16.msra.mxu0 0
    %357 = vmatprep.subr.bf16.mxu0 0
    %358 = vmatpush1.bf16.msra.mxu0 0
    %359 = vmatprep.mubr.bf16.mxu0 0
    %360 = vmatmul.mubr.bf16.gmra.mrb[0].mxu0 %v253
    %v361 = vpop.f32.mrb[0].mxu0
    %v362 = vadd.f32 %v277, %v361
    %v363 = vpop.f32.mrb[0].mxu0
    %v364 = vpop.f32.mrb[0].mxu0
    %v365 = vadd.f32 %v277, %v364
    %v366 = vpop.f32.mrb[0].mxu0
    %367 = vmatprep.mubr.bf16.mxu0 0
    %368 = vmatmul.mubr.bf16.gmra.mrb[0].mxu0 %v254
    %v369 = vpop.f32.mrb[0].mxu0
    %v370 = vadd.f32 %v277, %v369
    %v371 = vpop.f32.mrb[0].mxu0
    %v372 = vpop.f32.mrb[0].mxu0
    %v373 = vadd.f32 %v277, %v372
    %v374 = vpop.f32.mrb[0].mxu0
    %375 = vmatprep.mubr.bf16.mxu0 0
    %376 = vmatmul.mubr.bf16.gmra.mrb[0].mxu0 %v255
    %v377 = vpop.f32.mrb[0].mxu0
    %v378 = vadd.f32 %v277, %v377
    %v379 = vpop.f32.mrb[0].mxu0
    %v380 = vpop.f32.mrb[0].mxu0
    %v381 = vadd.f32 %v277, %v380
    %v382 = vpop.f32.mrb[0].mxu0
    %383 = vdwg.mxu0
    %v384 = vmax.f32 %v362, 0.0
    %v385 = vmax.f32 %v365, 0.0
    %v386 = vmax.f32 %v370, 0.0
    %v387 = vmax.f32 %v373, 0.0
    %v388 = vmax.f32 %v378, 0.0
    %v389 = vmax.f32 %v381, 0.0
    %v390 = vpack.c.bf16 %v385, %v384
    %v391 = vpack.c.bf16 %v387, %v386
    %v392 = vpack.c.bf16 %v389, %v388
    %v393 = vld [vmem:[#allocation10] sm:$0xf]
    %v394 = vld [vmem:[#allocation10 + $0x4] sm:$0xf]
    %v395 = vld [vmem:[#allocation10 + $0x8] sm:$0xf]
    %v396 = vld [vmem:[#allocation10 + $0xc] sm:$0xf]
    %v397 = vld [vmem:[#allocation10 + $0x10] sm:$0xf]
    %v398 = vld [vmem:[#allocation10 + $0x14] sm:$0xf]
    %v399 = vld [vmem:[#allocation10 + $0x18] sm:$0xf]
    %v400 = vld [vmem:[#allocation10 + $0x1c] sm:$0xf]
    %v401 = vld [vmem:[#allocation10 + $0x20] sm:$0xf]
    %v402 = vld [vmem:[#allocation10 + $0x24] sm:$0xf]
    %v403 = vld [vmem:[#allocation10 + $0x28] sm:$0xf]
    %v404 = vld [vmem:[#allocation10 + $0x2c] sm:$0xf]
    %v405 = vld [vmem:[#allocation10 + $0x30] sm:$0xf]
    %v406 = vld [vmem:[#allocation10 + $0x34] sm:$0xf]
    %v407 = vld [vmem:[#allocation10 + $0x38] sm:$0xf]
    %v408 = vld [vmem:[#allocation10 + $0x3c] sm:$0xf]
    %v409 = vld [vmem:[%s6] sm:$0x1]
    %v411 = vlaneseq
    %v412 = vshrl.u32 %v411, 7
    %v413 = vsub.s32 0, %v412
    %v414 = vrot.slane %v409, %v413
    %v432 = vunpack.c.l.b16 %v393
    %v433 = vunpack.c.l.b16 %v394
    %v434 = vunpack.c.l.b16 %v395
    %v435 = vunpack.c.l.b16 %v396
    %v436 = vunpack.c.l.b16 %v397
    %v437 = vunpack.c.l.b16 %v398
    %v438 = vunpack.c.l.b16 %v399
    %v439 = vunpack.c.l.b16 %v400
    %v440 = vunpack.c.l.b16 %v401
    %v441 = vunpack.c.l.b16 %v402
    %v442 = vunpack.c.l.b16 %v403
    %v443 = vunpack.c.l.b16 %v404
    %v444 = vunpack.c.l.b16 %v405
    %v445 = vunpack.c.l.b16 %v406
    %v446 = vunpack.c.l.b16 %v407
    %v447 = vunpack.c.l.b16 %v408
    %v448 = vpack.c.b16 %v433, %v432
    %v449 = vpack.c.b16 %v435, %v434
    %v450 = vpack.c.b16 %v437, %v436
    %v451 = vpack.c.b16 %v439, %v438
    %v452 = vpack.c.b16 %v441, %v440
    %v453 = vpack.c.b16 %v443, %v442
    %v454 = vpack.c.b16 %v445, %v444
    %v455 = vpack.c.b16 %v447, %v446
    %464 = vmatprep.subr.bf16.mxu0 0
    %465 = vmatpush1.bf16.msra.mxu0 %v448
    %466 = vmatprep.subr.bf16.mxu0 0
    %467 = vmatpush1.bf16.msra.mxu0 %v449
    %468 = vmatprep.subr.bf16.mxu0 0
    %469 = vmatpush1.bf16.msra.mxu0 %v450
    %470 = vmatprep.subr.bf16.mxu0 0
    %471 = vmatpush1.bf16.msra.mxu0 %v451
    %472 = vmatprep.subr.bf16.mxu0 0
    %473 = vmatpush1.bf16.msra.mxu0 %v452
    %474 = vmatprep.subr.bf16.mxu0 0
    %475 = vmatpush1.bf16.msra.mxu0 %v453
    %476 = vmatprep.subr.bf16.mxu0 0
    %477 = vmatpush1.bf16.msra.mxu0 %v454
    %478 = vmatprep.subr.bf16.mxu0 0
    %479 = vmatpush1.bf16.msra.mxu0 %v455
    %480 = vmatprep.subr.bf16.mxu0 0
    %481 = vmatpush1.bf16.msra.mxu0 0
    %482 = vmatprep.subr.bf16.mxu0 0
    %483 = vmatpush1.bf16.msra.mxu0 0
    %484 = vmatprep.subr.bf16.mxu0 0
    %485 = vmatpush1.bf16.msra.mxu0 0
    %486 = vmatprep.subr.bf16.mxu0 0
    %487 = vmatpush1.bf16.msra.mxu0 0
    %488 = vmatprep.subr.bf16.mxu0 0
    %489 = vmatpush1.bf16.msra.mxu0 0
    %490 = vmatprep.subr.bf16.mxu0 0
    %491 = vmatpush1.bf16.msra.mxu0 0
    %492 = vmatprep.subr.bf16.mxu0 0
    %493 = vmatpush1.bf16.msra.mxu0 0
    %494 = vmatprep.subr.bf16.mxu0 0
    %495 = vmatpush1.bf16.msra.mxu0 0
    %496 = vmatprep.mubr.bf16.mxu0 0
    %497 = vmatmul.mubr.bf16.gmra.mrb[0].mxu0 %v390
    %v498 = vpop.f32.mrb[0].mxu0
    %v499 = vadd.f32 %v414, %v498
    %v500 = vpop.f32.mrb[0].mxu0
    %v501 = vpop.f32.mrb[0].mxu0
    %v502 = vadd.f32 %v414, %v501
    %v503 = vpop.f32.mrb[0].mxu0
    %504 = vmatprep.mubr.bf16.mxu0 0
    %505 = vmatmul.mubr.bf16.gmra.mrb[0].mxu0 %v391
    %v506 = vpop.f32.mrb[0].mxu0
    %v507 = vadd.f32 %v414, %v506
    %v508 = vpop.f32.mrb[0].mxu0
    %v509 = vpop.f32.mrb[0].mxu0
    %v510 = vadd.f32 %v414, %v509
    %v511 = vpop.f32.mrb[0].mxu0
    %512 = vmatprep.mubr.bf16.mxu0 0
    %513 = vmatmul.mubr.bf16.gmra.mrb[0].mxu0 %v392
    %v514 = vpop.f32.mrb[0].mxu0
    %v515 = vadd.f32 %v414, %v514
    %v516 = vpop.f32.mrb[0].mxu0
    %v517 = vpop.f32.mrb[0].mxu0
    %v518 = vadd.f32 %v414, %v517
    %v519 = vpop.f32.mrb[0].mxu0
    %520 = vdwg.mxu0
    %521 = vst [vmem:[#allocation11] sm:$0xff] %v499
    %522 = vst [vmem:[#allocation11 + $0x8] sm:$0xff] %v502
    %523 = vst [vmem:[#allocation11 + $0x10] sm:$0xff] %v507
    %524 = vst [vmem:[#allocation11 + $0x18] sm:$0xff] %v510
    %525 = vst [vmem:[#allocation11 + $0x20] sm:$0xff] %v515
    %526 = vst [vmem:[#allocation11 + $0x28] sm:$0xff] %v518
    // Predicated region
    $region50: #{tpu_custom_call.1} parent=1 // pred_check
      _
    $region51: #{tpu_custom_call.1} parent=1 // pred_check_branch
      %528 = sbr.rel (0) target = $region53
    $region52: #{tpu_custom_call.1} parent=1 // pred_region
      %s530 = ssub.s32 768, 768
      %531 = vsyncadd [#allocation4], %s530
      %s532 = sshll.u32 [#allocation11], 4
      %s533 = int_to_ptr.vmem [resolvable:$true] %s532
      %538 = dma.vmem_to_hbm [thread:$0]  %s533, 768, %s7, [#allocation4], 128, 128, 8
    $region53: #{tpu_custom_call.1} parent=1 // pred_fallthru
      _
    // Predicated region
    $region54: #{tpu_custom_call.1} parent=1 // pred_check
      _
    $region55: #{tpu_custom_call.1} parent=1 // pred_check_branch
      %540 = sbr.rel (0) target = $region57
    $region56: #{tpu_custom_call.1} parent=1 // pred_region
      %541 = dma.done [#allocation4], 768
    $region57: #{tpu_custom_call.1} parent=1 // pred_fallthru
      _
    %542 = vsyncpa [#allocation3], 1
    %543 = vsyncpa [#allocation6], 1
    %544 = vsyncpa [#allocation9], 1
    %545 = vsyncpa [#allocation4], 1

</llo_original>
